<compile_context>
chip_gen: v7x
topology: tpu7x:2x2x1
jax: 0.10.0
libtpu: 0.0.40
codegen_flags: <defaults>
</compile_context>

<pallas_src>
import functools

import jax
import jax.numpy as jnp
from jax.experimental import pallas as pl
from jax.experimental.pallas import tpu as pltpu

_MIB = 1024 * 1024


def _round_up(x, m):
    return (x + m - 1) // m * m


def _round_down_min(x, m):
    return max(m, (x // m) * m)


@functools.lru_cache(maxsize=None)
def _vmem_capacity_bytes():
    """Physical VMEM per TensorCore; conservative fallback if the query fails."""
    try:
        return int(pltpu.get_tpu_info().vmem_capacity_bytes)
    except Exception:
        return 64 * _MIB  # v7x per-TC size; safe lower bound for v5e/v6e too.


@functools.lru_cache(maxsize=None)
def _pipeline_mode_supported():
    """One-time probe: does this JAX plumb BlockSpec.pipeline_mode through
    pallas_call?  Only the probe sits in a try/except — the real kernel never
    hides behind one."""
    try:
        def _k(x_ref, o_ref):
            o_ref[...] = x_ref[...] + 1.0

        spec = pl.BlockSpec((8, 128), lambda i: (0, 0),
                            pipeline_mode=pl.Buffered(1))
        fn = pl.pallas_call(
            _k,
            out_shape=jax.ShapeDtypeStruct((8, 128), jnp.float32),
            grid=(1,),
            in_specs=[spec],
            out_specs=pl.BlockSpec((8, 128), lambda i: (0, 0)),
        )
        jax.jit(fn).lower(jax.ShapeDtypeStruct((8, 128), jnp.float32)).compile()
        return True
    except Exception:
        return False


def _make_kernel(tn, n_col_tiles, n_axis):
    def kernel(x_ref, w_ref, b_ref, o_ref):
        # x_ref: (tm, H), w_ref: (H, tn), b_ref: (1, tn), o_ref: (tm, tn)
        x = x_ref[...]
        y = jnp.dot(x, w_ref[...], preferred_element_type=jnp.float32)
        y = y + b_ref[...].astype(jnp.float32)
        if n_col_tiles == 1:
            x_res = x                                 # tn == H: whole tile
        else:
            col0 = pl.multiple_of(pl.program_id(n_axis) * tn, tn)
            x_res = x_ref[:, pl.ds(col0, tn)]         # residual columns of this N tile
        o_ref[...] = (x_res.astype(jnp.float32) + y).astype(o_ref.dtype)
    return kernel


@functools.partial(
    jax.jit,
    static_argnames=("tm", "tn", "m_outer", "buffer_weight", "vmem_limit_bytes"))
def _residual_call(x, w, b, *, tm, tn, m_outer, buffer_weight, vmem_limit_bytes):
    B, S, H = x.shape
    M = B * S
    x2 = x.reshape(M, H)
    b2 = b.reshape(1, H)

    isz = jnp.dtype(x.dtype).itemsize
    wsz = jnp.dtype(w.dtype).itemsize
    n_m = pl.cdiv(M, tm)          # last block may be partial; stores are masked
    n_n = H // tn

    kernel = _make_kernel(tn, n_n, 1 if m_outer else 0)

    # Honest traffic estimate (includes refetch of whichever operand is inner).
    if m_outer:
        x_bytes, w_bytes = M * H * isz, n_m * H * H * wsz
    else:
        x_bytes, w_bytes = n_n * M * H * isz, H * H * wsz
    cost = pl.CostEstimate(
        flops=2 * M * H * H,
        transcendentals=0,
        bytes_accessed=x_bytes + w_bytes + H * wsz + M * H * isz)

    # Single-buffer the weight/bias only when their block index is grid
    # invariant (n_n == 1); otherwise keep double buffering so the weight DMA
    # hides behind the MXU work.
    extra = dict(pipeline_mode=pl.Buffered(1)) if buffer_weight else {}

    if m_outer:
        grid = (n_m, n_n)
        x_spec = pl.BlockSpec((tm, H), lambda i, j: (i, 0))
        w_spec = pl.BlockSpec((H, tn), lambda i, j: (0, j), **extra)
        b_spec = pl.BlockSpec((1, tn), lambda i, j: (0, j), **extra)
        o_spec = pl.BlockSpec((tm, tn), lambda i, j: (i, j))
    else:  # N outer: each weight column tile fetched once, x rows streamed
        grid = (n_n, n_m)
        x_spec = pl.BlockSpec((tm, H), lambda j, i: (i, 0))
        w_spec = pl.BlockSpec((H, tn), lambda j, i: (0, j), **extra)
        b_spec = pl.BlockSpec((1, tn), lambda j, i: (0, j), **extra)
        o_spec = pl.BlockSpec((tm, tn), lambda j, i: (i, j))

    grid_spec = pltpu.PrefetchScalarGridSpec(
        num_scalar_prefetch=0,
        grid=grid,
        in_specs=[x_spec, w_spec, b_spec],
        out_specs=o_spec,
    )
    out2 = pl.pallas_call(
        kernel,
        out_shape=jax.ShapeDtypeStruct((M, H), x.dtype),
        grid_spec=grid_spec,
        compiler_params=pltpu.CompilerParams(
            dimension_semantics=("parallel", "parallel"),
            vmem_limit_bytes=vmem_limit_bytes),
        cost_estimate=cost,
    )(x2, w, b2)
    return out2.reshape(B, S, H)


def residual_forward(x, w, b, *, tm=None, tn=None, vmem_limit_bytes=None):
    """out = x + (x @ w + b);  x: (B, S, H), w: (H, H), b: (H,)."""
    B, S, H = x.shape
    assert w.shape == (H, H) and b.shape == (H,)
    M = B * S
    isz = jnp.dtype(x.dtype).itemsize
    wsz = jnp.dtype(w.dtype).itemsize

    vmem_cap = _vmem_capacity_bytes()
    if vmem_limit_bytes is None:
        # Headroom for Mosaic internal scratch (v7x: 64 MiB/TC); use most of
        # the 128 MiB on v5e/v6e so a fully resident weight stays legal.
        vmem_limit_bytes = max(32 * _MIB, min(vmem_cap - 16 * _MIB, 112 * _MIB))

    # ---- column (weight / output N) tile --------------------------------
    if tn is None:
        tn = H
        # Keep the (possibly double-buffered) weight well inside the budget,
        # otherwise tile N at ~8 MiB weight column tiles.
        if H % 128 == 0 and 2 * H * H * wsz > vmem_limit_bytes // 2:
            target = _round_down_min((8 * _MIB) // (H * wsz), 128)
            cand = min(_round_up(target, 128), H)
            while cand >= 128 and H % cand != 0:
                cand -= 128
            tn = cand if cand >= 128 else H
    assert H % tn == 0 and (tn == H or tn % 128 == 0)
    n_n = H // tn

    # ---- row (M) tile ----------------------------------------------------
    if tm is None:
        # ~4 MiB of x rows per tile; 256-row multiples fill the v6e/v7x MXU.
        tm = _round_up(max(256, (4 * _MIB) // (H * isz)), 256)
    tm = _round_up(tm, 256)
    # Cap by VMEM: x and out tiles are double-buffered by the pipeline.
    max_rows = (vmem_limit_bytes // 3) // (2 * (H + tn) * isz)
    tm = min(tm, _round_down_min(max_rows, 256))
    tm = min(tm, _round_up(M, 256))
    n_m = pl.cdiv(M, tm)

    # ---- grid order: minimize refetch traffic of the inner operand --------
    if n_n == 1:
        m_outer = True
    else:
        weight_refetch = (n_m - 1) * H * H * wsz     # cost of M-outer order
        x_refetch = (n_n - 1) * M * H * isz          # cost of N-outer order
        m_outer = weight_refetch <= x_refetch

    buffer_weight = (n_n == 1) and _pipeline_mode_supported()

    return _residual_call(x, w, b, tm=tm, tn=tn, m_outer=m_outer,
                          buffer_weight=buffer_weight,
                          vmem_limit_bytes=vmem_limit_bytes)


if __name__ == "__main__":
    # TODO(synk): training-mode stochastic depth (drop > 0) not implemented;
    # with the module default drop=0 the forward is exactly x + func(x).
    B, S, H = 2, 8, 128          # H multiple of 128 -> lane-dense output stores
    key = jax.random.PRNGKey(0)
    kx, kw, kb = jax.random.split(key, 3)

    # bf16 storage, f32 accumulation (halves HBM traffic, doubles MXU rate).
    x = jax.random.normal(kx, (B, S, H), dtype=jnp.float32).astype(jnp.bfloat16)
    w = (jax.random.normal(kw, (H, H), dtype=jnp.float32) * 0.05).astype(jnp.bfloat16)
    b = (jax.random.normal(kb, (H,), dtype=jnp.float32) * 0.05).astype(jnp.bfloat16)

    out = jax.block_until_ready(residual_forward(x, w, b))

    # Pure-JAX reference at matching precision: bf16 inputs, f32 math, bf16 store.
    xf, wf, bf = (t.astype(jnp.float32) for t in (x, w, b))
    ref = (xf + (jnp.einsum("bsh,hk->bsk", xf, wf) + bf)).astype(jnp.bfloat16)

    assert out.shape == (B, S, H)
    assert out.dtype == x.dtype
    assert jnp.allclose(out.astype(jnp.float32), ref.astype(jnp.float32),
                        atol=5e-2, rtol=5e-2), "mismatch vs reference"

    print("KERNEL_OK")
</pallas_src>

<mosaic_0001>
module attributes {stable_mosaic.version = 11 : i64} {
  func.func @kernel(%arg0: i32, %arg1: i32, %arg2: memref<256x128xbf16, #tpu.memory_space<vmem>>, %arg3: memref<128x128xbf16, #tpu.memory_space<vmem>>, %arg4: memref<1x128xbf16, #tpu.memory_space<vmem>>, %arg5: memref<256x128xbf16, #tpu.memory_space<vmem>>) attributes {dimension_semantics = [#tpu.dimension_semantics<parallel>, #tpu.dimension_semantics<parallel>], iteration_bounds = array<i64: 1, 1>, scalar_prefetch = 0 : i64, scratch_operands = 0 : i64, tpu.core_type = #tpu.core_type<tc>, window_params = [{transform_indices = @transform_0, window_bounds = array<i64: 256, 128>}, {transform_indices = @transform_1, window_bounds = array<i64: 128, 128>}, {transform_indices = @transform_2, window_bounds = array<i64: 1, 128>}, {transform_indices = @transform_3, window_bounds = array<i64: 256, 128>}]} {
    %c0 = arith.constant 0 : index
    %c0_0 = arith.constant 0 : index
    %0 = vector.load %arg2[%c0, %c0_0] : memref<256x128xbf16, #tpu.memory_space<vmem>>, vector<256x128xbf16>
    %c0_1 = arith.constant 0 : index
    %c0_2 = arith.constant 0 : index
    %1 = vector.load %arg3[%c0_1, %c0_2] : memref<128x128xbf16, #tpu.memory_space<vmem>>, vector<128x128xbf16>
    %cst = arith.constant dense<0.000000e+00> : vector<256x128xf32>
    %2 = tpu.matmul %0, %1, %cst {dimension_numbers = #tpu.dot_dimension_numbers<[1], [0], [0], [1], [0, 0, 1, 1], [], []>} : vector<256x128xbf16>, vector<128x128xbf16>, vector<256x128xf32> -> vector<256x128xf32>
    %c0_3 = arith.constant 0 : index
    %c0_4 = arith.constant 0 : index
    %3 = vector.load %arg4[%c0_3, %c0_4] : memref<1x128xbf16, #tpu.memory_space<vmem>>, vector<1x128xbf16>
    %4 = arith.extf %3 : vector<1x128xbf16> to vector<1x128xf32>
    %5 = vector.broadcast %4 : vector<1x128xf32> to vector<256x128xf32>
    %6 = arith.addf %2, %5 : vector<256x128xf32>
    %7 = arith.extf %0 : vector<256x128xbf16> to vector<256x128xf32>
    %8 = arith.addf %7, %6 : vector<256x128xf32>
    %9 = arith.truncf %8 : vector<256x128xf32> to vector<256x128xbf16>
    %c0_5 = arith.constant 0 : index
    %c0_6 = arith.constant 0 : index
    %10 = vector.load %arg5[%c0_5, %c0_6] : memref<256x128xbf16, #tpu.memory_space<vmem>>, vector<256x128xbf16>
    tpu.vector_store %arg5[%c0_5, %c0_6], %9 {strides = array<i32>} : memref<256x128xbf16, #tpu.memory_space<vmem>>, vector<256x128xbf16>,
    return
  }
  func.func @transform_0(%arg0: i32, %arg1: i32) -> (i32, i32) {
    %c0_i32 = arith.constant 0 : i32
    %c0_i32_0 = arith.constant 0 : i32
    return %arg0, %c0_i32 : i32, i32
  }
  func.func @transform_1(%arg0: i32, %arg1: i32) -> (i32, i32) {
    %c0_i32 = arith.constant 0 : i32
    %c0_i32_0 = arith.constant 0 : i32
    return %c0_i32, %arg1 : i32, i32
  }
  func.func @transform_2(%arg0: i32, %arg1: i32) -> (i32, i32) {
    %c0_i32 = arith.constant 0 : i32
    %c0_i32_0 = arith.constant 0 : i32
    return %c0_i32, %arg1 : i32, i32
  }
  func.func @transform_3(%arg0: i32, %arg1: i32) -> (i32, i32) {
    %c0_i32 = arith.constant 0 : i32
    return %arg0, %arg1 : i32, i32
  }
}

</mosaic_0001>

<llo_original>
// kernel: _residual_call.1
$region0: #{_residual_call.1}
  #allocation0 [shape = 'u32[]', space=smem, size = 0x4, offset = 0x4, fixed_abs, tag = 'smem constant byte address 0x4 - core index']
  #allocation1 [shape = 'u32[144,128]{1,0:T(1,128)}', space=vmem, size = 0x12000, scoped, tag = 'internal scratch']
  %s0 = inlined_call_operand.hbm [shape: bf16[16,128], index: 0, kind: input, shape index: {}]
  %s1 = inlined_call_operand.hbm [shape: bf16[128,128], index: 1, kind: input, shape index: {}]
  %s2 = inlined_call_operand.vmem [shape: bf16[1,128], index: 2, kind: input, shape index: {}]
  %s3 = inlined_call_operand.hbm [shape: bf16[16,128], index: 3, kind: output, shape index: {}]
  %s4 = sld [smem:[#allocation0]]
  $region30: #{_residual_call.1} parent=0
    _
  %s6 = ssub.s32 1, %s4
  %s7 = scalar_select 0, %s6, %s4
  $region1: #{_residual_call.1} parent=0
    #allocation2 [shape = 'u8[65536]{0}', space=vmem, size = 0x10000, scoped, tag = 'input window, operand 0, single buffered']
    #allocation3 [shape = 's32[1]{0}', space=sflag, size = 0x4, scoped, tag = 'scoped memory for _residual_call.1']
    #allocation4 [shape = 's32[1]{0}', space=sflag, size = 0x4, scoped, tag = 'scoped memory for _residual_call.1']
    #allocation5 [shape = 'u8[32768]{0}', space=vmem, size = 0x8000, scoped, tag = 'input window, operand 1, single buffered']
    #allocation6 [shape = 's32[1]{0}', space=sflag, size = 0x4, scoped, tag = 'scoped memory for _residual_call.1']
    #allocation7 [shape = 'u8[65536]{0}', space=vmem, size = 0x10000, scoped, tag = 'output window, operand 0, single buffered']
    %8 = vsyncpa [#allocation3], 0
    %9 = vsyncpa [#allocation6], 0
    %10 = vsyncpa [#allocation4], 0
    // Predicated region
    $region2: #{_residual_call.1} parent=1 // pred_check
      _
    $region3: #{_residual_call.1} parent=1 // pred_check_branch
      %12 = sbr.rel (0) target = $region5
    $region4: #{_residual_call.1} parent=1 // pred_region
      %s14 = ssub.s32 2048, 128
      %15 = vsyncadd [#allocation3], %s14
      %s16 = sshll.u32 [#allocation2], 4
      %s17 = int_to_ptr.vmem [resolvable:$true] %s16
      %22 = dma.hbm_to_vmem [thread:$0]  %s0, 128, %s17, [#allocation3], 64, 64, 4
    $region5: #{_residual_call.1} parent=1 // pred_fallthru
      _
    // Predicated region
    $region6: #{_residual_call.1} parent=1 // pred_check
      _
    $region7: #{_residual_call.1} parent=1 // pred_check_branch
      %24 = sbr.rel (0) target = $region9
    $region8: #{_residual_call.1} parent=1 // pred_region
      %s26 = ssub.s32 1024, 1024
      %27 = vsyncadd [#allocation6], %s26
      %s28 = sshll.u32 [#allocation5], 4
      %s29 = int_to_ptr.vmem [resolvable:$true] %s28
      %34 = dma.hbm_to_vmem [thread:$0]  %s1, 1024, %s29, [#allocation6], 64, 64, 4
    $region9: #{_residual_call.1} parent=1 // pred_fallthru
      _
    // Predicated region
    $region10: #{_residual_call.1} parent=1 // pred_check
      _
    $region11: #{_residual_call.1} parent=1 // pred_check_branch
      %36 = sbr.rel (0) target = $region13
    $region12: #{_residual_call.1} parent=1 // pred_region
      _
    $region13: #{_residual_call.1} parent=1 // pred_fallthru
      _
    // Predicated region
    $region14: #{_residual_call.1} parent=1 // pred_check
      _
    $region15: #{_residual_call.1} parent=1 // pred_check_branch
      %38 = sbr.rel (0) target = $region17
    $region16: #{_residual_call.1} parent=1 // pred_region
      %39 = dma.done [#allocation3], 2048
    $region17: #{_residual_call.1} parent=1 // pred_fallthru
      _
    // Predicated region
    $region18: #{_residual_call.1} parent=1 // pred_check
      _
    $region19: #{_residual_call.1} parent=1 // pred_check_branch
      %41 = sbr.rel (0) target = $region21
    $region20: #{_residual_call.1} parent=1 // pred_region
      %42 = dma.done [#allocation6], 1024
    $region21: #{_residual_call.1} parent=1 // pred_fallthru
      _
    %v44 = vld [vmem:[#allocation2] sm:$0xf]
    %v45 = vld [vmem:[#allocation2 + $0x4] sm:$0xf]
    %v46 = vld [vmem:[#allocation2 + $0x8] sm:$0xf]
    %v47 = vld [vmem:[#allocation2 + $0xc] sm:$0xf]
    %v48 = vld [vmem:[#allocation2 + $0x10] sm:$0xf]
    %v49 = vld [vmem:[#allocation2 + $0x14] sm:$0xf]
    %v50 = vld [vmem:[#allocation2 + $0x18] sm:$0xf]
    %v51 = vld [vmem:[#allocation2 + $0x1c] sm:$0xf]
    %v52 = vld [vmem:[#allocation2 + $0x20] sm:$0xf]
    %v53 = vld [vmem:[#allocation2 + $0x24] sm:$0xf]
    %v54 = vld [vmem:[#allocation2 + $0x28] sm:$0xf]
    %v55 = vld [vmem:[#allocation2 + $0x2c] sm:$0xf]
    %v56 = vld [vmem:[#allocation2 + $0x30] sm:$0xf]
    %v57 = vld [vmem:[#allocation2 + $0x34] sm:$0xf]
    %v58 = vld [vmem:[#allocation2 + $0x38] sm:$0xf]
    %v59 = vld [vmem:[#allocation2 + $0x3c] sm:$0xf]
    %v60 = vld [vmem:[#allocation2 + $0x40] sm:$0xf]
    %v61 = vld [vmem:[#allocation2 + $0x44] sm:$0xf]
    %v62 = vld [vmem:[#allocation2 + $0x48] sm:$0xf]
    %v63 = vld [vmem:[#allocation2 + $0x4c] sm:$0xf]
    %v64 = vld [vmem:[#allocation2 + $0x50] sm:$0xf]
    %v65 = vld [vmem:[#allocation2 + $0x54] sm:$0xf]
    %v66 = vld [vmem:[#allocation2 + $0x58] sm:$0xf]
    %v67 = vld [vmem:[#allocation2 + $0x5c] sm:$0xf]
    %v68 = vld [vmem:[#allocation2 + $0x60] sm:$0xf]
    %v69 = vld [vmem:[#allocation2 + $0x64] sm:$0xf]
    %v70 = vld [vmem:[#allocation2 + $0x68] sm:$0xf]
    %v71 = vld [vmem:[#allocation2 + $0x6c] sm:$0xf]
    %v72 = vld [vmem:[#allocation2 + $0x70] sm:$0xf]
    %v73 = vld [vmem:[#allocation2 + $0x74] sm:$0xf]
    %v74 = vld [vmem:[#allocation2 + $0x78] sm:$0xf]
    %v75 = vld [vmem:[#allocation2 + $0x7c] sm:$0xf]
    %v76 = vld [vmem:[#allocation5] sm:$0xf]
    %v77 = vld [vmem:[#allocation5 + $0x4] sm:$0xf]
    %v78 = vld [vmem:[#allocation5 + $0x8] sm:$0xf]
    %v79 = vld [vmem:[#allocation5 + $0xc] sm:$0xf]
    %v80 = vld [vmem:[#allocation5 + $0x10] sm:$0xf]
    %v81 = vld [vmem:[#allocation5 + $0x14] sm:$0xf]
    %v82 = vld [vmem:[#allocation5 + $0x18] sm:$0xf]
    %v83 = vld [vmem:[#allocation5 + $0x1c] sm:$0xf]
    %v84 = vld [vmem:[#allocation5 + $0x20] sm:$0xf]
    %v85 = vld [vmem:[#allocation5 + $0x24] sm:$0xf]
    %v86 = vld [vmem:[#allocation5 + $0x28] sm:$0xf]
    %v87 = vld [vmem:[#allocation5 + $0x2c] sm:$0xf]
    %v88 = vld [vmem:[#allocation5 + $0x30] sm:$0xf]
    %v89 = vld [vmem:[#allocation5 + $0x34] sm:$0xf]
    %v90 = vld [vmem:[#allocation5 + $0x38] sm:$0xf]
    %v91 = vld [vmem:[#allocation5 + $0x3c] sm:$0xf]
    %v92 = vld [vmem:[%s2] sm:$0x1]
    %v93 = vunpack.c.l.bf16 %v92
    %v94 = vlaneseq
    %v95 = vshrl.u32 %v94, 7
    %v96 = vsub.s32 0, %v95
    %v97 = vrot.slane %v93, %v96
    %v130 = vunpack.c.l.b16 %v44
    %v131 = vunpack.c.l.b16 %v45
    %v132 = vunpack.c.l.b16 %v46
    %v133 = vunpack.c.l.b16 %v47
    %v134 = vunpack.c.l.b16 %v48
    %v135 = vunpack.c.l.b16 %v49
    %v136 = vunpack.c.l.b16 %v50
    %v137 = vunpack.c.l.b16 %v51
    %v138 = vunpack.c.l.b16 %v52
    %v139 = vunpack.c.l.b16 %v53
    %v140 = vunpack.c.l.b16 %v54
    %v141 = vunpack.c.l.b16 %v55
    %v142 = vunpack.c.l.b16 %v56
    %v143 = vunpack.c.l.b16 %v57
    %v144 = vunpack.c.l.b16 %v58
    %v145 = vunpack.c.l.b16 %v59
    %v146 = vunpack.c.l.b16 %v60
    %v147 = vunpack.c.l.b16 %v61
    %v148 = vunpack.c.l.b16 %v62
    %v149 = vunpack.c.l.b16 %v63
    %v150 = vunpack.c.l.b16 %v64
    %v151 = vunpack.c.l.b16 %v65
    %v152 = vunpack.c.l.b16 %v66
    %v153 = vunpack.c.l.b16 %v67
    %v154 = vunpack.c.l.b16 %v68
    %v155 = vunpack.c.l.b16 %v69
    %v156 = vunpack.c.l.b16 %v70
    %v157 = vunpack.c.l.b16 %v71
    %v158 = vunpack.c.l.b16 %v72
    %v159 = vunpack.c.l.b16 %v73
    %v160 = vunpack.c.l.b16 %v74
    %v161 = vunpack.c.l.b16 %v75
    %v162 = vpack.c.b16 %v131, %v130
    %v163 = vpack.c.b16 %v133, %v132
    %v164 = vpack.c.b16 %v135, %v134
    %v165 = vpack.c.b16 %v137, %v136
    %v166 = vpack.c.b16 %v139, %v138
    %v167 = vpack.c.b16 %v141, %v140
    %v168 = vpack.c.b16 %v143, %v142
    %v169 = vpack.c.b16 %v145, %v144
    %v170 = vpack.c.b16 %v147, %v146
    %v171 = vpack.c.b16 %v149, %v148
    %v172 = vpack.c.b16 %v151, %v150
    %v173 = vpack.c.b16 %v153, %v152
    %v174 = vpack.c.b16 %v155, %v154
    %v175 = vpack.c.b16 %v157, %v156
    %v176 = vpack.c.b16 %v159, %v158
    %v177 = vpack.c.b16 %v161, %v160
    %v210 = vunpack.c.l.b16 %v76
    %v211 = vunpack.c.l.b16 %v77
    %v212 = vunpack.c.l.b16 %v78
    %v213 = vunpack.c.l.b16 %v79
    %v214 = vunpack.c.l.b16 %v80
    %v215 = vunpack.c.l.b16 %v81
    %v216 = vunpack.c.l.b16 %v82
    %v217 = vunpack.c.l.b16 %v83
    %v218 = vunpack.c.l.b16 %v84
    %v219 = vunpack.c.l.b16 %v85
    %v220 = vunpack.c.l.b16 %v86
    %v221 = vunpack.c.l.b16 %v87
    %v222 = vunpack.c.l.b16 %v88
    %v223 = vunpack.c.l.b16 %v89
    %v224 = vunpack.c.l.b16 %v90
    %v225 = vunpack.c.l.b16 %v91
    %v226 = vpack.c.b16 %v211, %v210
    %v227 = vpack.c.b16 %v213, %v212
    %v228 = vpack.c.b16 %v215, %v214
    %v229 = vpack.c.b16 %v217, %v216
    %v230 = vpack.c.b16 %v219, %v218
    %v231 = vpack.c.b16 %v221, %v220
    %v232 = vpack.c.b16 %v223, %v222
    %v233 = vpack.c.b16 %v225, %v224
    %242 = vmatprep.subr.bf16.mxu0 0
    %243 = vmatpush1.bf16.msra.mxu0 %v226
    %244 = vmatprep.subr.bf16.mxu0 0
    %245 = vmatpush1.bf16.msra.mxu0 %v227
    %246 = vmatprep.subr.bf16.mxu0 0
    %247 = vmatpush1.bf16.msra.mxu0 %v228
    %248 = vmatprep.subr.bf16.mxu0 0
    %249 = vmatpush1.bf16.msra.mxu0 %v229
    %250 = vmatprep.subr.bf16.mxu0 0
    %251 = vmatpush1.bf16.msra.mxu0 %v230
    %252 = vmatprep.subr.bf16.mxu0 0
    %253 = vmatpush1.bf16.msra.mxu0 %v231
    %254 = vmatprep.subr.bf16.mxu0 0
    %255 = vmatpush1.bf16.msra.mxu0 %v232
    %256 = vmatprep.subr.bf16.mxu0 0
    %257 = vmatpush1.bf16.msra.mxu0 %v233
    %258 = vmatprep.subr.bf16.mxu0 0
    %259 = vmatpush1.bf16.msra.mxu0 0
    %260 = vmatprep.subr.bf16.mxu0 0
    %261 = vmatpush1.bf16.msra.mxu0 0
    %262 = vmatprep.subr.bf16.mxu0 0
    %263 = vmatpush1.bf16.msra.mxu0 0
    %264 = vmatprep.subr.bf16.mxu0 0
    %265 = vmatpush1.bf16.msra.mxu0 0
    %266 = vmatprep.subr.bf16.mxu0 0
    %267 = vmatpush1.bf16.msra.mxu0 0
    %268 = vmatprep.subr.bf16.mxu0 0
    %269 = vmatpush1.bf16.msra.mxu0 0
    %270 = vmatprep.subr.bf16.mxu0 0
    %271 = vmatpush1.bf16.msra.mxu0 0
    %272 = vmatprep.subr.bf16.mxu0 0
    %273 = vmatpush1.bf16.msra.mxu0 0
    %274 = vmatprep.mubr.bf16.mxu0 0
    %275 = vmatmul.mubr.bf16.gmra.mrb[0].mxu0 %v162
    %v276 = vpop.f32.mrb[0].mxu0
    %v277 = vadd.f32 %v97, %v276
    %v278 = vpop.f32.mrb[0].mxu0
    %v279 = vpop.f32.mrb[0].mxu0
    %v280 = vadd.f32 %v97, %v279
    %v281 = vpop.f32.mrb[0].mxu0
    %282 = vmatprep.mubr.bf16.mxu0 0
    %283 = vmatmul.mubr.bf16.gmra.mrb[0].mxu0 %v163
    %v284 = vpop.f32.mrb[0].mxu0
    %v285 = vadd.f32 %v97, %v284
    %v286 = vpop.f32.mrb[0].mxu0
    %v287 = vpop.f32.mrb[0].mxu0
    %v288 = vadd.f32 %v97, %v287
    %v289 = vpop.f32.mrb[0].mxu0
    %290 = vmatprep.mubr.bf16.mxu0 0
    %291 = vmatmul.mubr.bf16.gmra.mrb[0].mxu0 %v164
    %v292 = vpop.f32.mrb[0].mxu0
    %v293 = vadd.f32 %v97, %v292
    %v294 = vpop.f32.mrb[0].mxu0
    %v295 = vpop.f32.mrb[0].mxu0
    %v296 = vadd.f32 %v97, %v295
    %v297 = vpop.f32.mrb[0].mxu0
    %298 = vmatprep.mubr.bf16.mxu0 0
    %299 = vmatmul.mubr.bf16.gmra.mrb[0].mxu0 %v165
    %v300 = vpop.f32.mrb[0].mxu0
    %v301 = vadd.f32 %v97, %v300
    %v302 = vpop.f32.mrb[0].mxu0
    %v303 = vpop.f32.mrb[0].mxu0
    %v304 = vadd.f32 %v97, %v303
    %v305 = vpop.f32.mrb[0].mxu0
    %306 = vmatprep.mubr.bf16.mxu0 0
    %307 = vmatmul.mubr.bf16.gmra.mrb[0].mxu0 %v166
    %v308 = vpop.f32.mrb[0].mxu0
    %v309 = vadd.f32 %v97, %v308
    %v310 = vpop.f32.mrb[0].mxu0
    %v311 = vpop.f32.mrb[0].mxu0
    %v312 = vadd.f32 %v97, %v311
    %v313 = vpop.f32.mrb[0].mxu0
    %314 = vmatprep.mubr.bf16.mxu0 0
    %315 = vmatmul.mubr.bf16.gmra.mrb[0].mxu0 %v167
    %v316 = vpop.f32.mrb[0].mxu0
    %v317 = vadd.f32 %v97, %v316
    %v318 = vpop.f32.mrb[0].mxu0
    %v319 = vpop.f32.mrb[0].mxu0
    %v320 = vadd.f32 %v97, %v319
    %v321 = vpop.f32.mrb[0].mxu0
    %322 = vmatprep.mubr.bf16.mxu0 0
    %323 = vmatmul.mubr.bf16.gmra.mrb[0].mxu0 %v168
    %v324 = vpop.f32.mrb[0].mxu0
    %v325 = vadd.f32 %v97, %v324
    %v326 = vpop.f32.mrb[0].mxu0
    %v327 = vpop.f32.mrb[0].mxu0
    %v328 = vadd.f32 %v97, %v327
    %v329 = vpop.f32.mrb[0].mxu0
    %330 = vmatprep.mubr.bf16.mxu0 0
    %331 = vmatmul.mubr.bf16.gmra.mrb[0].mxu0 %v169
    %v332 = vpop.f32.mrb[0].mxu0
    %v333 = vadd.f32 %v97, %v332
    %v334 = vpop.f32.mrb[0].mxu0
    %v335 = vpop.f32.mrb[0].mxu0
    %v336 = vadd.f32 %v97, %v335
    %v337 = vpop.f32.mrb[0].mxu0
    %338 = vmatprep.mubr.bf16.mxu0 0
    %339 = vmatmul.mubr.bf16.gmra.mrb[0].mxu0 %v170
    %v340 = vpop.f32.mrb[0].mxu0
    %v341 = vadd.f32 %v97, %v340
    %v342 = vpop.f32.mrb[0].mxu0
    %v343 = vpop.f32.mrb[0].mxu0
    %v344 = vadd.f32 %v97, %v343
    %v345 = vpop.f32.mrb[0].mxu0
    %346 = vmatprep.mubr.bf16.mxu0 0
    %347 = vmatmul.mubr.bf16.gmra.mrb[0].mxu0 %v171
    %v348 = vpop.f32.mrb[0].mxu0
    %v349 = vadd.f32 %v97, %v348
    %v350 = vpop.f32.mrb[0].mxu0
    %v351 = vpop.f32.mrb[0].mxu0
    %v352 = vadd.f32 %v97, %v351
    %v353 = vpop.f32.mrb[0].mxu0
    %354 = vmatprep.mubr.bf16.mxu0 0
    %355 = vmatmul.mubr.bf16.gmra.mrb[0].mxu0 %v172
    %v356 = vpop.f32.mrb[0].mxu0
    %v357 = vadd.f32 %v97, %v356
    %v358 = vpop.f32.mrb[0].mxu0
    %v359 = vpop.f32.mrb[0].mxu0
    %v360 = vadd.f32 %v97, %v359
    %v361 = vpop.f32.mrb[0].mxu0
    %362 = vmatprep.mubr.bf16.mxu0 0
    %363 = vmatmul.mubr.bf16.gmra.mrb[0].mxu0 %v173
    %v364 = vpop.f32.mrb[0].mxu0
    %v365 = vadd.f32 %v97, %v364
    %v366 = vpop.f32.mrb[0].mxu0
    %v367 = vpop.f32.mrb[0].mxu0
    %v368 = vadd.f32 %v97, %v367
    %v369 = vpop.f32.mrb[0].mxu0
    %370 = vmatprep.mubr.bf16.mxu0 0
    %371 = vmatmul.mubr.bf16.gmra.mrb[0].mxu0 %v174
    %v372 = vpop.f32.mrb[0].mxu0
    %v373 = vadd.f32 %v97, %v372
    %v374 = vpop.f32.mrb[0].mxu0
    %v375 = vpop.f32.mrb[0].mxu0
    %v376 = vadd.f32 %v97, %v375
    %v377 = vpop.f32.mrb[0].mxu0
    %378 = vmatprep.mubr.bf16.mxu0 0
    %379 = vmatmul.mubr.bf16.gmra.mrb[0].mxu0 %v175
    %v380 = vpop.f32.mrb[0].mxu0
    %v381 = vadd.f32 %v97, %v380
    %v382 = vpop.f32.mrb[0].mxu0
    %v383 = vpop.f32.mrb[0].mxu0
    %v384 = vadd.f32 %v97, %v383
    %v385 = vpop.f32.mrb[0].mxu0
    %386 = vmatprep.mubr.bf16.mxu0 0
    %387 = vmatmul.mubr.bf16.gmra.mrb[0].mxu0 %v176
    %v388 = vpop.f32.mrb[0].mxu0
    %v389 = vadd.f32 %v97, %v388
    %v390 = vpop.f32.mrb[0].mxu0
    %v391 = vpop.f32.mrb[0].mxu0
    %v392 = vadd.f32 %v97, %v391
    %v393 = vpop.f32.mrb[0].mxu0
    %394 = vmatprep.mubr.bf16.mxu0 0
    %395 = vmatmul.mubr.bf16.gmra.mrb[0].mxu0 %v177
    %v396 = vpop.f32.mrb[0].mxu0
    %v397 = vadd.f32 %v97, %v396
    %v398 = vpop.f32.mrb[0].mxu0
    %v399 = vpop.f32.mrb[0].mxu0
    %v400 = vadd.f32 %v97, %v399
    %v401 = vpop.f32.mrb[0].mxu0
    %402 = vdwg.mxu0
    %v403 = vunpack.c.l.bf16 %v44
    %v404 = vunpack.c.l.bf16 %v45
    %v405 = vunpack.c.l.bf16 %v46
    %v406 = vunpack.c.l.bf16 %v47
    %v407 = vunpack.c.l.bf16 %v48
    %v408 = vunpack.c.l.bf16 %v49
    %v409 = vunpack.c.l.bf16 %v50
    %v410 = vunpack.c.l.bf16 %v51
    %v411 = vunpack.c.l.bf16 %v52
    %v412 = vunpack.c.l.bf16 %v53
    %v413 = vunpack.c.l.bf16 %v54
    %v414 = vunpack.c.l.bf16 %v55
    %v415 = vunpack.c.l.bf16 %v56
    %v416 = vunpack.c.l.bf16 %v57
    %v417 = vunpack.c.l.bf16 %v58
    %v418 = vunpack.c.l.bf16 %v59
    %v419 = vunpack.c.l.bf16 %v60
    %v420 = vunpack.c.l.bf16 %v61
    %v421 = vunpack.c.l.bf16 %v62
    %v422 = vunpack.c.l.bf16 %v63
    %v423 = vunpack.c.l.bf16 %v64
    %v424 = vunpack.c.l.bf16 %v65
    %v425 = vunpack.c.l.bf16 %v66
    %v426 = vunpack.c.l.bf16 %v67
    %v427 = vunpack.c.l.bf16 %v68
    %v428 = vunpack.c.l.bf16 %v69
    %v429 = vunpack.c.l.bf16 %v70
    %v430 = vunpack.c.l.bf16 %v71
    %v431 = vunpack.c.l.bf16 %v72
    %v432 = vunpack.c.l.bf16 %v73
    %v433 = vunpack.c.l.bf16 %v74
    %v434 = vunpack.c.l.bf16 %v75
    %v435 = vadd.f32 %v403, %v277
    %v436 = vadd.f32 %v404, %v280
    %v437 = vadd.f32 %v405, %v285
    %v438 = vadd.f32 %v406, %v288
    %v439 = vadd.f32 %v407, %v293
    %v440 = vadd.f32 %v408, %v296
    %v441 = vadd.f32 %v409, %v301
    %v442 = vadd.f32 %v410, %v304
    %v443 = vadd.f32 %v411, %v309
    %v444 = vadd.f32 %v412, %v312
    %v445 = vadd.f32 %v413, %v317
    %v446 = vadd.f32 %v414, %v320
    %v447 = vadd.f32 %v415, %v325
    %v448 = vadd.f32 %v416, %v328
    %v449 = vadd.f32 %v417, %v333
    %v450 = vadd.f32 %v418, %v336
    %v451 = vadd.f32 %v419, %v341
    %v452 = vadd.f32 %v420, %v344
    %v453 = vadd.f32 %v421, %v349
    %v454 = vadd.f32 %v422, %v352
    %v455 = vadd.f32 %v423, %v357
    %v456 = vadd.f32 %v424, %v360
    %v457 = vadd.f32 %v425, %v365
    %v458 = vadd.f32 %v426, %v368
    %v459 = vadd.f32 %v427, %v373
    %v460 = vadd.f32 %v428, %v376
    %v461 = vadd.f32 %v429, %v381
    %v462 = vadd.f32 %v430, %v384
    %v463 = vadd.f32 %v431, %v389
    %v464 = vadd.f32 %v432, %v392
    %v465 = vadd.f32 %v433, %v397
    %v466 = vadd.f32 %v434, %v400
    %v467 = vpack.c.bf16 %v436, %v435
    %v468 = vpack.c.bf16 %v438, %v437
    %v469 = vpack.c.bf16 %v440, %v439
    %v470 = vpack.c.bf16 %v442, %v441
    %v471 = vpack.c.bf16 %v444, %v443
    %v472 = vpack.c.bf16 %v446, %v445
    %v473 = vpack.c.bf16 %v448, %v447
    %v474 = vpack.c.bf16 %v450, %v449
    %v475 = vpack.c.bf16 %v452, %v451
    %v476 = vpack.c.bf16 %v454, %v453
    %v477 = vpack.c.bf16 %v456, %v455
    %v478 = vpack.c.bf16 %v458, %v457
    %v479 = vpack.c.bf16 %v460, %v459
    %v480 = vpack.c.bf16 %v462, %v461
    %v481 = vpack.c.bf16 %v464, %v463
    %v482 = vpack.c.bf16 %v466, %v465
    %v499 = vunpack.c.l.b16 %v467
    %v500 = vunpack.c.h.b16 %v467
    %v501 = vunpack.c.l.b16 %v468
    %v502 = vunpack.c.h.b16 %v468
    %v503 = vunpack.c.l.b16 %v469
    %v504 = vunpack.c.h.b16 %v469
    %v505 = vunpack.c.l.b16 %v470
    %v506 = vunpack.c.h.b16 %v470
    %v507 = vunpack.c.l.b16 %v471
    %v508 = vunpack.c.h.b16 %v471
    %v509 = vunpack.c.l.b16 %v472
    %v510 = vunpack.c.h.b16 %v472
    %v511 = vunpack.c.l.b16 %v473
    %v512 = vunpack.c.h.b16 %v473
    %v513 = vunpack.c.l.b16 %v474
    %v514 = vunpack.c.h.b16 %v474
    %v515 = vunpack.c.l.b16 %v475
    %v516 = vunpack.c.h.b16 %v475
    %v517 = vunpack.c.l.b16 %v476
    %v518 = vunpack.c.h.b16 %v476
    %v519 = vunpack.c.l.b16 %v477
    %v520 = vunpack.c.h.b16 %v477
    %v521 = vunpack.c.l.b16 %v478
    %v522 = vunpack.c.h.b16 %v478
    %v523 = vunpack.c.l.b16 %v479
    %v524 = vunpack.c.h.b16 %v479
    %v525 = vunpack.c.l.b16 %v480
    %v526 = vunpack.c.h.b16 %v480
    %v527 = vunpack.c.l.b16 %v481
    %v528 = vunpack.c.h.b16 %v481
    %v529 = vunpack.c.l.b16 %v482
    %v530 = vunpack.c.h.b16 %v482
    %v531 = vpack.c.b16 %v499, %v499
    %v532 = vpack.c.b16 %v500, %v500
    %v533 = vpack.c.b16 %v501, %v501
    %v534 = vpack.c.b16 %v502, %v502
    %v535 = vpack.c.b16 %v503, %v503
    %v536 = vpack.c.b16 %v504, %v504
    %v537 = vpack.c.b16 %v505, %v505
    %v538 = vpack.c.b16 %v506, %v506
    %v539 = vpack.c.b16 %v507, %v507
    %v540 = vpack.c.b16 %v508, %v508
    %v541 = vpack.c.b16 %v509, %v509
    %v542 = vpack.c.b16 %v510, %v510
    %v543 = vpack.c.b16 %v511, %v511
    %v544 = vpack.c.b16 %v512, %v512
    %v545 = vpack.c.b16 %v513, %v513
    %v546 = vpack.c.b16 %v514, %v514
    %v547 = vpack.c.b16 %v515, %v515
    %v548 = vpack.c.b16 %v516, %v516
    %v549 = vpack.c.b16 %v517, %v517
    %v550 = vpack.c.b16 %v518, %v518
    %v551 = vpack.c.b16 %v519, %v519
    %v552 = vpack.c.b16 %v520, %v520
    %v553 = vpack.c.b16 %v521, %v521
    %v554 = vpack.c.b16 %v522, %v522
    %v555 = vpack.c.b16 %v523, %v523
    %v556 = vpack.c.b16 %v524, %v524
    %v557 = vpack.c.b16 %v525, %v525
    %v558 = vpack.c.b16 %v526, %v526
    %v559 = vpack.c.b16 %v527, %v527
    %v560 = vpack.c.b16 %v528, %v528
    %v561 = vpack.c.b16 %v529, %v529
    %v562 = vpack.c.b16 %v530, %v530
    %595 = vst [vmem:[#allocation7] sm:$0xf] %v531
    %596 = vst [vmem:[#allocation7 + $0x4] sm:$0xf] %v532
    %597 = vst [vmem:[#allocation7 + $0x8] sm:$0xf] %v533
    %598 = vst [vmem:[#allocation7 + $0xc] sm:$0xf] %v534
    %599 = vst [vmem:[#allocation7 + $0x10] sm:$0xf] %v535
    %600 = vst [vmem:[#allocation7 + $0x14] sm:$0xf] %v536
    %601 = vst [vmem:[#allocation7 + $0x18] sm:$0xf] %v537
    %602 = vst [vmem:[#allocation7 + $0x1c] sm:$0xf] %v538
    %603 = vst [vmem:[#allocation7 + $0x20] sm:$0xf] %v539
    %604 = vst [vmem:[#allocation7 + $0x24] sm:$0xf] %v540
    %605 = vst [vmem:[#allocation7 + $0x28] sm:$0xf] %v541
    %606 = vst [vmem:[#allocation7 + $0x2c] sm:$0xf] %v542
    %607 = vst [vmem:[#allocation7 + $0x30] sm:$0xf] %v543
    %608 = vst [vmem:[#allocation7 + $0x34] sm:$0xf] %v544
    %609 = vst [vmem:[#allocation7 + $0x38] sm:$0xf] %v545
    %610 = vst [vmem:[#allocation7 + $0x3c] sm:$0xf] %v546
    %611 = vst [vmem:[#allocation7 + $0x40] sm:$0xf] %v547
    %612 = vst [vmem:[#allocation7 + $0x44] sm:$0xf] %v548
    %613 = vst [vmem:[#allocation7 + $0x48] sm:$0xf] %v549
    %614 = vst [vmem:[#allocation7 + $0x4c] sm:$0xf] %v550
    %615 = vst [vmem:[#allocation7 + $0x50] sm:$0xf] %v551
    %616 = vst [vmem:[#allocation7 + $0x54] sm:$0xf] %v552
    %617 = vst [vmem:[#allocation7 + $0x58] sm:$0xf] %v553
    %618 = vst [vmem:[#allocation7 + $0x5c] sm:$0xf] %v554
    %619 = vst [vmem:[#allocation7 + $0x60] sm:$0xf] %v555
    %620 = vst [vmem:[#allocation7 + $0x64] sm:$0xf] %v556
    %621 = vst [vmem:[#allocation7 + $0x68] sm:$0xf] %v557
    %622 = vst [vmem:[#allocation7 + $0x6c] sm:$0xf] %v558
    %623 = vst [vmem:[#allocation7 + $0x70] sm:$0xf] %v559
    %624 = vst [vmem:[#allocation7 + $0x74] sm:$0xf] %v560
    %625 = vst [vmem:[#allocation7 + $0x78] sm:$0xf] %v561
    %626 = vst [vmem:[#allocation7 + $0x7c] sm:$0xf] %v562
    // Predicated region
    $region22: #{_residual_call.1} parent=1 // pred_check
      _
    $region23: #{_residual_call.1} parent=1 // pred_check_branch
      %628 = sbr.rel (0) target = $region25
    $region24: #{_residual_call.1} parent=1 // pred_region
      %s630 = ssub.s32 2048, 128
      %631 = vsyncadd [#allocation4], %s630
      %s632 = sshll.u32 [#allocation7], 4
      %s633 = int_to_ptr.vmem [resolvable:$true] %s632
      %638 = dma.vmem_to_hbm [thread:$0]  %s633, 128, %s3, [#allocation4], 64, 64, 4
    $region25: #{_residual_call.1} parent=1 // pred_fallthru
      _
    // Predicated region
    $region26: #{_residual_call.1} parent=1 // pred_check
      _
    $region27: #{_residual_call.1} parent=1 // pred_check_branch
      %640 = sbr.rel (0) target = $region29
    $region28: #{_residual_call.1} parent=1 // pred_region
      %641 = dma.done [#allocation4], 2048
    $region29: #{_residual_call.1} parent=1 // pred_fallthru
      _
    %642 = vsyncpa [#allocation3], 1
    %643 = vsyncpa [#allocation6], 1
    %644 = vsyncpa [#allocation4], 1

</llo_original>
